<compile_context>
chip_gen: v6e
topology: v6e:2x2x1
jax: 0.10.0
libtpu: 0.0.40
codegen_flags: <defaults>
</compile_context>

<pallas_src>
import jax
import jax.numpy as jnp
import numpy as np
from jax.experimental import pallas as pl
from jax.experimental.pallas import tpu as pltpu


def _build_pe_table(d_model: int, max_len: int = 500) -> jnp.ndarray:
    """Deterministic sin/cos positional-encoding table, shape (1, max_len, d_model)."""
    position = jnp.arange(0, max_len, dtype=jnp.float32)[:, None]          # (max_len, 1)
    div_term = jnp.exp(
        jnp.arange(0, d_model, 2, dtype=jnp.float32)
        * -(jnp.log(jnp.float32(10000.0)) / d_model)
    )                                                                       # (d_model//2,)
    pe = jnp.zeros((max_len, d_model), dtype=jnp.float32)
    pe = pe.at[:, 0::2].set(jnp.sin(position * div_term))
    pe = pe.at[:, 1::2].set(jnp.cos(position * div_term))
    return pe[None, :, :]                                                   # (1, max_len, d_model)


def _pe_add_kernel(x_ref, pe_ref, o_ref):
    # x_ref / o_ref: (tb, tc) lane-dense tiles.  pe_ref: (1, tc) — cheap
    # sublane broadcast in the VPU add; store is a full-width vst.
    o_ref[...] = x_ref[...] + pe_ref[...]


def _round_up(n: int, m: int) -> int:
    return (n + m - 1) // m * m


def _choose_tiles(B: int, F: int, itemsize: int, target_tile_bytes: int = 4 << 20):
    """Pick exact-divisor (row, col) tiles of ~target_tile_bytes.

    Caller guarantees B % sublane_tile == 0 and F % 128 == 0 (via padding).
    If the whole array would collapse into a single tile while being larger
    than ~1 MiB, split one axis so the grid has >= 2 steps (v7x megacore)."""
    sub = 8 * max(1, 4 // itemsize)          # min sublane tile: 8 (f32), 16 (bf16), 32 (i8)

    tc = min(F, max(128, (target_tile_bytes // (sub * itemsize)) // 128 * 128))
    while F % tc != 0:                       # keep the grid exact (no partial blocks)
        tc -= 128

    rows = max(sub, (target_tile_bytes // (tc * itemsize)) // sub * sub)
    tb = min(B, rows)
    while B % tb != 0:
        tb -= sub

    # Megacore: ensure >= 2 grid steps for non-tiny arrays so both v7x TCs stream.
    if (B // tb) * (F // tc) == 1 and B * F * itemsize > (1 << 20):
        if tb > sub:                         # prefer splitting rows (keeps lane-dense tc)
            cand = tb - sub
            while cand >= sub:
                if B % cand == 0:
                    tb = cand
                    break
                cand -= sub
        if (B // tb) * (F // tc) == 1 and tc > 128:
            cand = tc - 128
            while cand >= 128:
                if F % cand == 0:
                    tc = cand
                    break
                cand -= 128
    return tb, tc


def positional_encoding_forward(x: jnp.ndarray, pe: jnp.ndarray,
                                *, min_pallas_bytes: int = 1 << 20) -> jnp.ndarray:
    """Pallas implementation of PositionalEncoding.forward.

    x : (B, S, D), pe: (1, max_len, D).
    Reproduces `x + pe[:, :x.size(0), :]` exactly (requires S == B, the only
    broadcast-valid usage of the reference module).
    """
    B, S, D = x.shape
    seq_len = B                              # x.size(0) in the PyTorch forward
    assert S == seq_len, "reference broadcast semantics require x.shape[1] == x.shape[0]"

    pe_slice = pe[0, :seq_len, :].astype(x.dtype)        # (S, D)
    itemsize = jnp.dtype(x.dtype).itemsize
    nbytes = B * S * D * itemsize

    # Tiny inputs: XLA fuses the add into neighbouring ops; Pallas launch +
    # per-step overhead would dominate.
    if nbytes < min_pallas_bytes:
        return x + pe_slice[None, :, :]

    # Flatten so the last (lane) dim is S*D; both reshapes are row-major no-ops.
    F = S * D
    x2 = x.reshape(B, F)
    pe2 = pe_slice.reshape(1, F)

    # Pad to lane/sublane-aligned extents so tiles stay exact divisors and
    # stores stay full-width (vst, not vst.msk) for any (B, S, D).
    sub = 8 * max(1, 4 // itemsize)
    Bp, Fp = _round_up(B, sub), _round_up(F, 128)
    padded = (Bp, Fp) != (B, F)
    if padded:
        x2 = jnp.pad(x2, ((0, Bp - B), (0, Fp - F)))
        pe2 = jnp.pad(pe2, ((0, 0), (0, Fp - F)))

    tb, tc = _choose_tiles(Bp, Fp, itemsize)

    # Columns OUTER, rows INNER: the pe block index (0, j) is constant across
    # the inner loop, so Pallas re-DMAs pe only Fp//tc times (not every step).
    grid = (Fp // tc, Bp // tb)

    out2 = pl.pallas_call(
        _pe_add_kernel,
        out_shape=jax.ShapeDtypeStruct((Bp, Fp), x.dtype),
        grid_spec=pltpu.PrefetchScalarGridSpec(
            num_scalar_prefetch=0,
            grid=grid,
            in_specs=[
                pl.BlockSpec((tb, tc), lambda j, i: (i, j)),   # streamed x tile
                pl.BlockSpec((1, tc), lambda j, i: (0, j)),    # pe row, constant over inner axis
            ],
            out_specs=pl.BlockSpec((tb, tc), lambda j, i: (i, j)),
        ),
        compiler_params=pltpu.CompilerParams(
            dimension_semantics=("parallel", "parallel"),
            vmem_limit_bytes=32 * 1024 * 1024,   # safe on v5e/v6e/v7x (double-buffered tiles + pe)
        ),
        input_output_aliases={0: 0},             # out reuses x's HBM buffer (in-place when donated)
        cost_estimate=pl.CostEstimate(
            flops=Bp * Fp,
            bytes_accessed=2 * Bp * Fp * itemsize + Fp * itemsize,
            transcendentals=0,
        ),
    )(x2, pe2)

    if padded:
        out2 = out2[:B, :F]
    return out2.reshape(B, S, D)


if __name__ == "__main__":
    max_len = 500

    # Primary demo shape consistent with the module: B == S == 8, d_model = 32.
    B, S, D = 8, 8, 32
    x = jax.random.normal(jax.random.PRNGKey(0), (B, S, D), dtype=jnp.float32)
    pe = _build_pe_table(D, max_len)
    ref = np.asarray(x) + np.asarray(pe[:, :B, :])          # PyTorch broadcast semantics

    out = positional_encoding_forward(x, pe, min_pallas_bytes=0)  # force the Pallas path
    out = jax.block_until_ready(out)
    np.testing.assert_allclose(np.asarray(out), ref, rtol=1e-6, atol=1e-6)

    # Secondary check: non-128-aligned F exercises the padding path, the
    # multi-step (pe-outer) grid, and the output aliasing at real size.
    B2, S2, D2 = 200, 200, 34
    x_big = jax.random.normal(jax.random.PRNGKey(1), (B2, S2, D2), dtype=jnp.float32)
    pe_big = _build_pe_table(D2, max_len)
    ref_big = np.asarray(x_big) + np.asarray(pe_big[:, :B2, :])
    out_big = jax.block_until_ready(
        positional_encoding_forward(x_big, pe_big, min_pallas_bytes=0))
    np.testing.assert_allclose(np.asarray(out_big), ref_big, rtol=1e-6, atol=1e-6)

    print("KERNEL_OK")
</pallas_src>

<mosaic_0001>
module attributes {stable_mosaic.version = 11 : i64} {
  func.func @_pe_add_kernel(%arg0: i32, %arg1: i32, %arg2: memref<8x256xf32, #tpu.memory_space<vmem>>, %arg3: memref<1x256xf32, #tpu.memory_space<vmem>>, %arg4: memref<8x256xf32, #tpu.memory_space<vmem>>) attributes {dimension_semantics = [#tpu.dimension_semantics<parallel>, #tpu.dimension_semantics<parallel>], iteration_bounds = array<i64: 1, 1>, scalar_prefetch = 0 : i64, scratch_operands = 0 : i64, tpu.core_type = #tpu.core_type<tc>, window_params = [{transform_indices = @transform_0, window_bounds = array<i64: 8, 256>}, {transform_indices = @transform_1, window_bounds = array<i64: 1, 256>}, {transform_indices = @transform_2, window_bounds = array<i64: 8, 256>}]} {
    %c0 = arith.constant 0 : index
    %c0_0 = arith.constant 0 : index
    %0 = vector.load %arg2[%c0, %c0_0] : memref<8x256xf32, #tpu.memory_space<vmem>>, vector<8x256xf32>
    %c0_1 = arith.constant 0 : index
    %c0_2 = arith.constant 0 : index
    %1 = vector.load %arg3[%c0_1, %c0_2] : memref<1x256xf32, #tpu.memory_space<vmem>>, vector<1x256xf32>
    %2 = vector.broadcast %1 : vector<1x256xf32> to vector<8x256xf32>
    %3 = arith.addf %0, %2 : vector<8x256xf32>
    %c0_3 = arith.constant 0 : index
    %c0_4 = arith.constant 0 : index
    %4 = vector.load %arg4[%c0_3, %c0_4] : memref<8x256xf32, #tpu.memory_space<vmem>>, vector<8x256xf32>
    tpu.vector_store %arg4[%c0_3, %c0_4], %3 {strides = array<i32>} : memref<8x256xf32, #tpu.memory_space<vmem>>, vector<8x256xf32>,
    return
  }
  func.func @transform_0(%arg0: i32, %arg1: i32) -> (i32, i32) {
    %c0_i32 = arith.constant 0 : i32
    return %arg1, %arg0 : i32, i32
  }
  func.func @transform_1(%arg0: i32, %arg1: i32) -> (i32, i32) {
    %c0_i32 = arith.constant 0 : i32
    %c0_i32_0 = arith.constant 0 : i32
    return %c0_i32, %arg0 : i32, i32
  }
  func.func @transform_2(%arg0: i32, %arg1: i32) -> (i32, i32) {
    %c0_i32 = arith.constant 0 : i32
    return %arg1, %arg0 : i32, i32
  }
}

</mosaic_0001>

<llo_original>
// kernel: tpu_custom_call.1
$region0: #{tpu_custom_call.1}
  #allocation0 [shape = 'u32[]', space=smem, size = 0x4, offset = 0x4, fixed_abs, tag = 'smem constant byte address 0x4 - core index']
  #allocation1 [shape = 'u32[144,128]{1,0:T(1,128)}', space=vmem, size = 0x12000, scoped, tag = 'internal scratch']
  %s0 = inlined_call_operand.hbm [shape: f32[8,256], index: 0, kind: input, shape index: {}, may-alias: {0,2}]
  %s1 = inlined_call_operand.vmem [shape: f32[1,256], index: 1, kind: input, shape index: {}]
  %s2 = inlined_call_operand.hbm [shape: f32[8,256], index: 2, kind: output, shape index: {}, may-alias: {0,2}]
  %s3 = sld [smem:[#allocation0]]
  $region22: #{tpu_custom_call.1} parent=0
    _
  %s5 = ssub.s32 1, %s3
  %s6 = scalar_select 0, %s5, %s3
  $region1: #{tpu_custom_call.1} parent=0
    #allocation2 [shape = 'u8[8192]{0}', space=vmem, size = 0x2000, scoped, tag = 'input window, operand 0, single buffered']
    #allocation3 [shape = 's32[1]{0}', space=sflag, size = 0x4, scoped, tag = 'scoped memory for tpu_custom_call.1']
    #allocation4 [shape = 's32[1]{0}', space=sflag, size = 0x4, scoped, tag = 'scoped memory for tpu_custom_call.1']
    #allocation5 [shape = 'u8[8192]{0}', space=vmem, size = 0x2000, scoped, tag = 'output window, operand 0, single buffered']
    %7 = vsyncpa [#allocation3], 0
    %8 = vsyncpa [#allocation4], 0
    // Predicated region
    $region2: #{tpu_custom_call.1} parent=1 // pred_check
      _
    $region3: #{tpu_custom_call.1} parent=1 // pred_check_branch
      %10 = sbr.rel (0) target = $region5
    $region4: #{tpu_custom_call.1} parent=1 // pred_region
      %s12 = ssub.s32 256, 256
      %13 = vsyncadd [#allocation3], %s12
      %s15 = sshll.u32 [#allocation2], 4
      %s16 = int_to_ptr.vmem [resolvable:$true] %s15
      %18 = dma.hbm_to_vmem [thread:$0]  %s0, 256, %s16, [#allocation3]
    $region5: #{tpu_custom_call.1} parent=1 // pred_fallthru
      _
    // Predicated region
    $region6: #{tpu_custom_call.1} parent=1 // pred_check
      _
    $region7: #{tpu_custom_call.1} parent=1 // pred_check_branch
      %20 = sbr.rel (0) target = $region9
    $region8: #{tpu_custom_call.1} parent=1 // pred_region
      _
    $region9: #{tpu_custom_call.1} parent=1 // pred_fallthru
      _
    // Predicated region
    $region10: #{tpu_custom_call.1} parent=1 // pred_check
      _
    $region11: #{tpu_custom_call.1} parent=1 // pred_check_branch
      %22 = sbr.rel (0) target = $region13
    $region12: #{tpu_custom_call.1} parent=1 // pred_region
      %23 = dma.done [#allocation3], 256
    $region13: #{tpu_custom_call.1} parent=1 // pred_fallthru
      _
    %v24 = vld [vmem:[#allocation2] sm:$0xff]
    %v25 = vld [vmem:[#allocation2 + $0x8] sm:$0xff]
    %v26 = vld [vmem:[%s1] sm:$0x3]
    %v28 = vlaneseq
    %v29 = vshrl.u32 %v28, 7
    %v30 = vsub.s32 0, %v29
    %v31 = vrot.slane %v26, %v30
    %v32 = vlaneseq
    %v33 = vshrl.u32 %v32, 7
    %v34 = vsub.s32 1, %v33
    %v35 = vrot.slane %v26, %v34
    %v38 = vadd.f32 %v24, %v31
    %v39 = vadd.f32 %v25, %v35
    %40 = vst [vmem:[#allocation5] sm:$0xff] %v38
    %41 = vst [vmem:[#allocation5 + $0x8] sm:$0xff] %v39
    // Predicated region
    $region14: #{tpu_custom_call.1} parent=1 // pred_check
      _
    $region15: #{tpu_custom_call.1} parent=1 // pred_check_branch
      %43 = sbr.rel (0) target = $region17
    $region16: #{tpu_custom_call.1} parent=1 // pred_region
      %s45 = ssub.s32 256, 256
      %46 = vsyncadd [#allocation4], %s45
      %s48 = sshll.u32 [#allocation5], 4
      %s49 = int_to_ptr.vmem [resolvable:$true] %s48
      %51 = dma.vmem_to_hbm [thread:$0]  %s49, 256, %s2, [#allocation4]
    $region17: #{tpu_custom_call.1} parent=1 // pred_fallthru
      _
    // Predicated region
    $region18: #{tpu_custom_call.1} parent=1 // pred_check
      _
    $region19: #{tpu_custom_call.1} parent=1 // pred_check_branch
      %53 = sbr.rel (0) target = $region21
    $region20: #{tpu_custom_call.1} parent=1 // pred_region
      %54 = dma.done [#allocation4], 256
    $region21: #{tpu_custom_call.1} parent=1 // pred_fallthru
      _
    %55 = vsyncpa [#allocation3], 1
    %56 = vsyncpa [#allocation4], 1

</llo_original>
